<compile_context>
chip_gen: v5e
topology: v5e:2x2
jax: 0.10.0
libtpu: 0.0.40
codegen_flags: <defaults>
</compile_context>

<pallas_src>
import functools
import itertools
import math

import numpy as np

import jax
import jax.numpy as jnp
from jax.experimental import pallas as pl
from jax.experimental.pallas import tpu as pltpu


# ----------------------------------------------------------------------------
# In-kernel helpers
# ----------------------------------------------------------------------------

def _gn_silu_math(x, gmat, gamma, beta, inv_n, eps):
    """GroupNorm + SiLU on a (C, HW) slab, one-pass statistics.

    Per-group statistics come from per-channel lane reductions combined with a
    (C, C) group-membership matrix (gmat[c1,c2] = 1 iff same group); the affine
    is folded into per-channel a,b so the slab is only touched once for the
    normalize.  All statistics in f32.  (E[x^2]-mean^2 is slightly less stable
    than the two-pass form; acceptable at f32.)
    """
    s1 = jnp.sum(x, axis=-1, keepdims=True)                                # (C,1)
    s2 = jnp.sum(x * x, axis=-1, keepdims=True)                            # (C,1)
    mean = jnp.dot(gmat, s1, preferred_element_type=jnp.float32) * inv_n   # (C,1)
    ex2 = jnp.dot(gmat, s2, preferred_element_type=jnp.float32) * inv_n    # (C,1)
    var = ex2 - mean * mean
    a = gamma * jax.lax.rsqrt(var + eps)                                   # (C,1)
    b = beta - mean * a                                                    # (C,1)
    y = x * a + b
    return y * jax.nn.sigmoid(y)                                           # SiLU


# ----------------------------------------------------------------------------
# Pallas kernels
# ----------------------------------------------------------------------------

def _gn_silu_kernel(x_ref, gamma_ref, beta_ref, gmat_ref, o_ref, *, inv_n, eps):
    """Fused GroupNorm + SiLU for one batch element: block (1, C, H*W)."""
    o_ref[0] = _gn_silu_math(x_ref[0], gmat_ref[...], gamma_ref[...],
                             beta_ref[...], inv_n, eps)


def _attn_block_kernel(x_ref, gamma_ref, beta_ref, gmat_ref,
                       wqkv_ref, bqkv_ref, wo_ref, bo_ref, o_ref,
                       *, inv_n, eps):
    """Fused AttentionBlock for one batch element.

    GN+SiLU -> lane-aligned Q/K/V projections (wqkv packed as (3, D, D) bf16,
    softmax scale pre-folded into the Q weight/bias) -> single-head attention
    over (S=C, D=H*W) -> output projection -> residual add with the pre-GN
    input.  Matmul operands bf16, accumulation & softmax stats f32, exact
    softmax division.
    """
    x = x_ref[0]                                                          # (S, D)
    h = _gn_silu_math(x, gmat_ref[...], gamma_ref[...], beta_ref[...],
                      inv_n, eps)
    hb = h.astype(jnp.bfloat16)
    q = jnp.dot(hb, wqkv_ref[0], preferred_element_type=jnp.float32) + bqkv_ref[0]
    k = jnp.dot(hb, wqkv_ref[1], preferred_element_type=jnp.float32) + bqkv_ref[1]
    v = jnp.dot(hb, wqkv_ref[2], preferred_element_type=jnp.float32) + bqkv_ref[2]
    s = jax.lax.dot_general(q.astype(jnp.bfloat16), k.astype(jnp.bfloat16),
                            (((1,), (1,)), ((), ())),
                            preferred_element_type=jnp.float32)           # (S, S)
    m = jnp.max(s, axis=-1, keepdims=True)
    e = jnp.exp(s - m)
    p = e / jnp.sum(e, axis=-1, keepdims=True)                            # exact
    o = jnp.dot(p.astype(jnp.bfloat16), v.astype(jnp.bfloat16),
                preferred_element_type=jnp.float32)
    a = jnp.dot(o.astype(jnp.bfloat16), wo_ref[...],
                preferred_element_type=jnp.float32) + bo_ref[...]
    o_ref[0] = x + a                                                      # residual


def _spectral_mix_kernel(xr_ref, xi_ref, wr_ref, wi_ref, yr_ref, yi_ref):
    """FourierConv2d hot path: per-frequency complex channel mixing.

    Y[o,p] = sum_i X[i,p] * W[o,i,p] (complex).  Weights stream in bf16 (2
    arrays, half the bytes of f32 and a third of the old Karatsuba triple) and
    are upcast in-kernel; accumulating fori_loop over Cin with unroll=4 to
    stay inside the 64-vreg budget.  Weights come in as (Cin, Cout_blk, P);
    x as (Cin, P) f32.
    """
    cin = wr_ref.shape[0]
    co, pp = yr_ref.shape

    def body(i, carry):
        accr, acci = carry
        xr = xr_ref[pl.ds(i, 1), :]                   # (1, P) f32
        xi = xi_ref[pl.ds(i, 1), :]
        wr = wr_ref[i].astype(jnp.float32)            # (Cout_blk, P)
        wi = wi_ref[i].astype(jnp.float32)
        accr = accr + (wr * xr - wi * xi)
        acci = acci + (wr * xi + wi * xr)
        return accr, acci

    zero = jnp.zeros((co, pp), jnp.float32)
    accr, acci = jax.lax.fori_loop(0, cin, body, (zero, zero), unroll=4)
    yr_ref[...] = accr
    yi_ref[...] = acci


def _linear_reparam_kernel(x_ref, wm_ref, wl_ref, bm_ref, bl_ref, n_ref,
                           out_ref, mu_ref, lv_ref, accm, accl):
    """Tiled Linear(N->2N) with fused reparametrization epilogue.

    grid = (N_tiles, K_tiles); K (contraction) is the last, 'arbitrary' axis.
    mu / logvar columns are handled as two weight halves so the epilogue can
    reparametrize per output tile.
    """
    k = pl.program_id(1)

    @pl.when(k == 0)
    def _():
        accm[...] = jnp.zeros_like(accm)
        accl[...] = jnp.zeros_like(accl)

    xb = x_ref[...]                                   # bf16 (B, tk)
    accm[...] += jnp.dot(xb, wm_ref[...], preferred_element_type=jnp.float32)
    accl[...] += jnp.dot(xb, wl_ref[...], preferred_element_type=jnp.float32)

    @pl.when(k == pl.num_programs(1) - 1)
    def _():
        mu = accm[...] + bm_ref[...]
        lv = jnp.clip(accl[...] + bl_ref[...], -30.0, 20.0)
        std = jnp.exp(0.5 * lv)
        out_ref[...] = (mu + n_ref[...] * std) * 0.18215
        mu_ref[...] = mu
        lv_ref[...] = lv


# ----------------------------------------------------------------------------
# Cached constant helpers
# ----------------------------------------------------------------------------

@functools.lru_cache(maxsize=None)
def _group_matrix(c, groups):
    cg = c // groups
    gid = np.arange(c) // cg
    return jnp.asarray((gid[:, None] == gid[None, :]).astype(np.float32))


# ----------------------------------------------------------------------------
# Wrappers around pallas_call
# ----------------------------------------------------------------------------

_GROUPS = 32
_EPS = 1e-5


def group_norm_silu(x, gamma, beta):
    B, C, H, W = x.shape
    HW = H * W
    inv_n = 1.0 / ((C // _GROUPS) * HW)
    gmat = _group_matrix(C, _GROUPS)
    out = pl.pallas_call(
        functools.partial(_gn_silu_kernel, inv_n=inv_n, eps=_EPS),
        out_shape=jax.ShapeDtypeStruct((B, C, HW), jnp.float32),
        grid=(B,),
        in_specs=[pl.BlockSpec((1, C, HW), lambda b: (b, 0, 0)),
                  pl.BlockSpec((C, 1), lambda b: (0, 0)),
                  pl.BlockSpec((C, 1), lambda b: (0, 0)),
                  pl.BlockSpec((C, C), lambda b: (0, 0))],
        out_specs=pl.BlockSpec((1, C, HW), lambda b: (b, 0, 0)),
        compiler_params=pltpu.CompilerParams(dimension_semantics=("parallel",)),
    )(x.reshape(B, C, HW), gamma.reshape(C, 1), beta.reshape(C, 1), gmat)
    return out.reshape(B, C, H, W)


def fourier_conv2d(x, p):
    """FNO-style FourierConv2d: rfft2 -> Pallas complex channel mix -> irfft2."""
    B, Cin, H, W = x.shape
    wr, wi, bias = p["wr"], p["wi"], p["b"]
    Cout = wr.shape[1]
    Wf = W // 2 + 1
    P = H * Wf                                        # true freq count; blocks
                                                      # use the full last dim.
    xf = jnp.fft.rfft2(x, axes=(-2, -1))              # (B, Cin, H, Wf)
    xr = jnp.real(xf).astype(jnp.float32).reshape(B, Cin, P)
    xi = jnp.imag(xf).astype(jnp.float32).reshape(B, Cin, P)

    co_blk = min(32, Cout)
    # Weight blocks on the slow (outer) axis, batch inner: each weight block is
    # DMA'd once and reused across all B batch elements.
    grid = (Cout // co_blk, B)
    yr, yi = pl.pallas_call(
        _spectral_mix_kernel,
        out_shape=(jax.ShapeDtypeStruct((B, Cout, P), jnp.float32),
                   jax.ShapeDtypeStruct((B, Cout, P), jnp.float32)),
        grid=grid,
        in_specs=[pl.BlockSpec((None, Cin, P), lambda j, b: (b, 0, 0)),
                  pl.BlockSpec((None, Cin, P), lambda j, b: (b, 0, 0)),
                  pl.BlockSpec((Cin, co_blk, P), lambda j, b: (0, j, 0)),
                  pl.BlockSpec((Cin, co_blk, P), lambda j, b: (0, j, 0))],
        out_specs=(pl.BlockSpec((None, co_blk, P), lambda j, b: (b, j, 0)),
                   pl.BlockSpec((None, co_blk, P), lambda j, b: (b, j, 0))),
        compiler_params=pltpu.CompilerParams(
            dimension_semantics=("parallel", "parallel")),
    )(xr, xi, wr, wi)

    yf = (yr + 1j * yi).reshape(B, Cout, H, Wf)
    y = jnp.fft.irfft2(yf, s=(H, W), axes=(-2, -1)).astype(jnp.float32)
    if bias is not None:
        y = y + bias[None, :, None, None]
    return y


def attention_block(x, p):
    """residual_connection(x, attn(rearrange(GN+SiLU(x), 'b c h w -> b c (h w)')))."""
    B, C, H, W = x.shape
    D = H * W
    inv_n = 1.0 / ((C // _GROUPS) * D)
    gmat = _group_matrix(C, _GROUPS)
    ap = p["attn"]
    # TODO(synk): for very large D (v7x, 64 MiB VMEM) the (3,D,D) resident
    # weight must be column-tiled; at these shapes it is a few hundred KB.
    out = pl.pallas_call(
        functools.partial(_attn_block_kernel, inv_n=inv_n, eps=_EPS),
        out_shape=jax.ShapeDtypeStruct((B, C, D), jnp.float32),
        grid=(B,),
        in_specs=[pl.BlockSpec((1, C, D), lambda b: (b, 0, 0)),
                  pl.BlockSpec((C, 1), lambda b: (0, 0)),
                  pl.BlockSpec((C, 1), lambda b: (0, 0)),
                  pl.BlockSpec((C, C), lambda b: (0, 0)),
                  pl.BlockSpec((3, D, D), lambda b: (0, 0, 0)),
                  pl.BlockSpec((3, 1, D), lambda b: (0, 0, 0)),
                  pl.BlockSpec((D, D), lambda b: (0, 0)),
                  pl.BlockSpec((1, D), lambda b: (0, 0))],
        out_specs=pl.BlockSpec((1, C, D), lambda b: (b, 0, 0)),
        compiler_params=pltpu.CompilerParams(dimension_semantics=("parallel",)),
    )(x.reshape(B, C, D),
      p["gn"]["gamma"].reshape(C, 1), p["gn"]["beta"].reshape(C, 1), gmat,
      ap["wqkv"], ap["bqkv"], ap["wo"], ap["bo"])
    return out.reshape(B, C, H, W)


def linear_reparam(x, fc, noise):
    """Tiled Linear(N -> 2N) with fused reparametrization epilogue."""
    B, K = x.shape
    N = fc["w_mu"].shape[1]
    tn, tk = min(512, N), min(512, K)
    assert N % tn == 0 and K % tk == 0
    grid = (N // tn, K // tk)
    xb = x.astype(jnp.bfloat16)
    out, mu, lv = pl.pallas_call(
        _linear_reparam_kernel,
        out_shape=(jax.ShapeDtypeStruct((B, N), jnp.float32),) * 3,
        grid=grid,
        in_specs=[pl.BlockSpec((B, tk), lambda j, k: (0, k)),
                  pl.BlockSpec((tk, tn), lambda j, k: (k, j)),
                  pl.BlockSpec((tk, tn), lambda j, k: (k, j)),
                  pl.BlockSpec((1, tn), lambda j, k: (0, j)),
                  pl.BlockSpec((1, tn), lambda j, k: (0, j)),
                  pl.BlockSpec((B, tn), lambda j, k: (0, j))],
        out_specs=(pl.BlockSpec((B, tn), lambda j, k: (0, j)),
                   pl.BlockSpec((B, tn), lambda j, k: (0, j)),
                   pl.BlockSpec((B, tn), lambda j, k: (0, j))),
        scratch_shapes=[pltpu.VMEM((B, tn), jnp.float32),
                        pltpu.VMEM((B, tn), jnp.float32)],
        compiler_params=pltpu.CompilerParams(
            dimension_semantics=("parallel", "arbitrary")),
    )(xb, fc["w_mu"], fc["w_lv"], fc["b_mu"], fc["b_lv"], noise)
    return out, mu, lv


# ----------------------------------------------------------------------------
# Encoder blocks (composition / glue)
# ----------------------------------------------------------------------------

def residual_block(x, p):
    h = group_norm_silu(x, p["gn1"]["gamma"], p["gn1"]["beta"])
    h = fourier_conv2d(h, p["fc1"])
    h = group_norm_silu(h, p["gn2"]["gamma"], p["gn2"]["beta"])
    h = fourier_conv2d(h, p["fc2"])
    r = x if p["res"] is None else fourier_conv2d(x, p["res"])
    return h + r


def downsampling_block(x, p):
    h = group_norm_silu(x, p["gn"]["gamma"], p["gn"]["beta"])
    B, C, H, W = h.shape
    # 2x2 max-pool in XLA (reshape+max): removes the O((H*W)^2) selection
    # matrices / 4 MXU matmuls of the previous version; the data is headed to
    # the XLA rfft2 next anyway.
    h = h.reshape(B, C, H // 2, 2, W // 2, 2).max(axis=(3, 5))
    return fourier_conv2d(h, p["fc"])


def encoder_forward(params, x, noise_key):
    hist = []
    for lp, dp in zip(params["layers"], params["downsampling"]):
        x = residual_block(x, lp["res_block"])
        x = attention_block(x, lp["attn_block"])
        hist.append(x)
        x = downsampling_block(x, dp)
    B = x.shape[0]
    c, hL, wL = params["c_last"], params["h_last"], params["w_last"]
    N = c * hL * wL
    xf = x.reshape(B, N)
    noise = jax.random.normal(noise_key, (B, N), jnp.float32)
    out, mu, logvar = linear_reparam(xf, params["fc"], noise)
    return out.reshape(B, c, hL, wL), mu, logvar, hist


# ----------------------------------------------------------------------------
# Deterministic parameter init (kernel-ready / pre-packed layouts)
# ----------------------------------------------------------------------------

def init_params(key, height, width, channel_blocks):
    counter = itertools.count()

    def nxt():
        return jax.random.fold_in(key, next(counter))

    def nrm(shape, scale=0.02):
        return scale * jax.random.normal(nxt(), shape, jnp.float32)

    def fconv(cin, cout, h, w, bias=True):
        wf = w // 2 + 1
        P = h * wf
        wr = nrm((cout, cin, h, wf)).reshape(cout, cin, P)
        wi = nrm((cout, cin, h, wf)).reshape(cout, cin, P)
        # (Cout,Cin,P) -> (Cin,Cout,P), bf16 to halve streamed weight bytes.
        wr = jnp.transpose(wr, (1, 0, 2)).astype(jnp.bfloat16)
        wi = jnp.transpose(wi, (1, 0, 2)).astype(jnp.bfloat16)
        return {"wr": wr, "wi": wi,
                "b": jnp.zeros((cout,), jnp.float32) if bias else None}

    def gn(c):
        return {"gamma": jnp.ones((c,), jnp.float32),
                "beta": jnp.zeros((c,), jnp.float32)}

    def attn(d):
        scale = 1.0 / math.sqrt(d)
        wq, wk, wv, wo = nrm((d, d)), nrm((d, d)), nrm((d, d)), nrm((d, d))
        # softmax 1/sqrt(D) folded into the Q weight (and bias, here zero).
        wqkv = jnp.stack([wq * scale, wk, wv], axis=0).astype(jnp.bfloat16)
        return {"wqkv": wqkv,
                "bqkv": jnp.zeros((3, 1, d), jnp.float32),
                "wo": wo.astype(jnp.bfloat16),
                "bo": jnp.zeros((1, d), jnp.float32)}

    layers, downs = [], []
    L = len(channel_blocks) - 1
    for i in range(L):
        cin, cout = channel_blocks[i], channel_blocks[i + 1]
        h, w = height // (2 ** i), width // (2 ** i)
        res_block = {"gn1": gn(cin),
                     "fc1": fconv(cin, cout, h, w, bias=True),
                     "gn2": gn(cout),
                     "fc2": fconv(cout, cout, h, w, bias=True),
                     "res": None if cin == cout else fconv(cin, cout, h, w, bias=True)}
        attn_block = {"gn": gn(cout), "attn": attn(h * w)}
        layers.append({"res_block": res_block, "attn_block": attn_block})
        downs.append({"gn": gn(cout),
                      "fc": fconv(cout, cout, h // 2, w // 2, bias=False)})

    h_last, w_last = height // (2 ** L), width // (2 ** L)
    n = channel_blocks[-1] * h_last * w_last
    w_full = nrm((n, 2 * n))
    fc = {"w_mu": w_full[:, :n].astype(jnp.bfloat16),
          "w_lv": w_full[:, n:].astype(jnp.bfloat16),
          "b_mu": jnp.zeros((1, n), jnp.float32),
          "b_lv": jnp.zeros((1, n), jnp.float32)}
    return {"layers": layers, "downsampling": downs, "fc": fc,
            "c_last": channel_blocks[-1], "h_last": h_last, "w_last": w_last}


# ----------------------------------------------------------------------------
# Main
# ----------------------------------------------------------------------------

if __name__ == "__main__":
    key = jax.random.PRNGKey(0)
    pkey, xkey, nkey = jax.random.split(key, 3)

    B = 2
    height = width = 16
    channel_blocks = (32, 32, 64)       # GroupNorm(32, C) requires C % 32 == 0

    params = init_params(pkey, height, width, channel_blocks)
    x = jax.random.normal(xkey, (B, channel_blocks[0], height, width), jnp.float32)

    out, mu, logvar, hist = encoder_forward(params, x, nkey)
    jax.block_until_ready((out, mu, logvar, hist))

    assert out.shape == (B, channel_blocks[-1], height // 4, width // 4)
    assert mu.shape == (B, channel_blocks[-1] * (height // 4) * (width // 4))
    assert len(hist) == len(channel_blocks) - 1
    print("KERNEL_OK")
</pallas_src>

<mosaic_0001>
module attributes {stable_mosaic.version = 11 : i64} {
  func.func @_gn_silu_kernel(%arg0: i32, %arg1: memref<1x32x256xf32, #tpu.memory_space<vmem>>, %arg2: memref<32x1xf32, #tpu.memory_space<vmem>>, %arg3: memref<32x1xf32, #tpu.memory_space<vmem>>, %arg4: memref<32x32xf32, #tpu.memory_space<vmem>>, %arg5: memref<1x32x256xf32, #tpu.memory_space<vmem>>) attributes {dimension_semantics = [#tpu.dimension_semantics<parallel>], iteration_bounds = array<i64: 2>, scalar_prefetch = 0 : i64, scratch_operands = 0 : i64, tpu.core_type = #tpu.core_type<tc>, window_params = [{transform_indices = @transform_0, window_bounds = array<i64: 1, 32, 256>}, {pipeline_mode = #tpu.pipeline_mode<synchronous>, transform_indices = @transform_1, window_bounds = array<i64: 32, 1>}, {pipeline_mode = #tpu.pipeline_mode<synchronous>, transform_indices = @transform_2, window_bounds = array<i64: 32, 1>}, {pipeline_mode = #tpu.pipeline_mode<synchronous>, transform_indices = @transform_3, window_bounds = array<i64: 32, 32>}, {transform_indices = @transform_4, window_bounds = array<i64: 1, 32, 256>}]} {
    %c0 = arith.constant 0 : index
    %c0_0 = arith.constant 0 : index
    %c0_1 = arith.constant 0 : index
    %0 = vector.load %arg1[%c0, %c0_0, %c0_1] : memref<1x32x256xf32, #tpu.memory_space<vmem>>, vector<1x32x256xf32>
    %1 = vector.shape_cast %0 : vector<1x32x256xf32> to vector<32x256xf32>
    %c0_2 = arith.constant 0 : index
    %c0_3 = arith.constant 0 : index
    %2 = vector.load %arg4[%c0_2, %c0_3] : memref<32x32xf32, #tpu.memory_space<vmem>>, vector<32x32xf32>
    %c0_4 = arith.constant 0 : index
    %c0_5 = arith.constant 0 : index
    %3 = vector.load %arg2[%c0_4, %c0_5] : memref<32x1xf32, #tpu.memory_space<vmem>>, vector<32x1xf32>
    %c0_6 = arith.constant 0 : index
    %c0_7 = arith.constant 0 : index
    %4 = vector.load %arg3[%c0_6, %c0_7] : memref<32x1xf32, #tpu.memory_space<vmem>>, vector<32x1xf32>
    %cst = arith.constant dense<0.000000e+00> : vector<32xf32>
    %5 = vector.multi_reduction <add>, %1, %cst [1] : vector<32x256xf32> to vector<32xf32>
    %6 = vector.shape_cast %5 : vector<32xf32> to vector<32x1xf32>
    %7 = arith.mulf %1, %1 : vector<32x256xf32>
    %cst_8 = arith.constant dense<0.000000e+00> : vector<32xf32>
    %8 = vector.multi_reduction <add>, %7, %cst_8 [1] : vector<32x256xf32> to vector<32xf32>
    %9 = vector.shape_cast %8 : vector<32xf32> to vector<32x1xf32>
    %cst_9 = arith.constant dense<0.000000e+00> : vector<32x1xf32>
    %10 = tpu.matmul %2, %6, %cst_9 {dimension_numbers = #tpu.dot_dimension_numbers<[1], [0], [0], [1], [0, 0, 1, 1], [], []>} : vector<32x32xf32>, vector<32x1xf32>, vector<32x1xf32> -> vector<32x1xf32>
    %cst_10 = arith.constant 3.906250e-03 : f32
    %11 = vector.broadcast %cst_10 : f32 to vector<32x1xf32>
    %12 = arith.mulf %10, %11 : vector<32x1xf32>
    %cst_11 = arith.constant dense<0.000000e+00> : vector<32x1xf32>
    %13 = tpu.matmul %2, %9, %cst_11 {dimension_numbers = #tpu.dot_dimension_numbers<[1], [0], [0], [1], [0, 0, 1, 1], [], []>} : vector<32x32xf32>, vector<32x1xf32>, vector<32x1xf32> -> vector<32x1xf32>
    %cst_12 = arith.constant 3.906250e-03 : f32
    %14 = vector.broadcast %cst_12 : f32 to vector<32x1xf32>
    %15 = arith.mulf %13, %14 : vector<32x1xf32>
    %16 = arith.mulf %12, %12 : vector<32x1xf32>
    %17 = arith.subf %15, %16 : vector<32x1xf32>
    %cst_13 = arith.constant 9.99999974E-6 : f32
    %18 = vector.broadcast %cst_13 : f32 to vector<32x1xf32>
    %19 = arith.addf %17, %18 : vector<32x1xf32>
    %20 = math.rsqrt %19 : vector<32x1xf32>
    %21 = arith.mulf %3, %20 : vector<32x1xf32>
    %22 = arith.mulf %12, %21 : vector<32x1xf32>
    %23 = arith.subf %4, %22 : vector<32x1xf32>
    %24 = vector.broadcast %21 : vector<32x1xf32> to vector<32x256xf32>
    %25 = arith.mulf %1, %24 : vector<32x256xf32>
    %26 = vector.broadcast %23 : vector<32x1xf32> to vector<32x256xf32>
    %27 = arith.addf %25, %26 : vector<32x256xf32>
    %28 = arith.negf %27 : vector<32x256xf32>
    %29 = math.exp %28 : vector<32x256xf32>
    %cst_14 = arith.constant 1.000000e+00 : f32
    %30 = vector.broadcast %cst_14 : f32 to vector<32x256xf32>
    %31 = arith.addf %30, %29 : vector<32x256xf32>
    %32 = arith.divf %30, %31 : vector<32x256xf32>
    %33 = arith.mulf %27, %32 : vector<32x256xf32>
    %c0_15 = arith.constant 0 : index
    %c0_16 = arith.constant 0 : index
    %c0_17 = arith.constant 0 : index
    %34 = vector.load %arg5[%c0_15, %c0_16, %c0_17] : memref<1x32x256xf32, #tpu.memory_space<vmem>>, vector<1x32x256xf32>
    %35 = vector.shape_cast %34 : vector<1x32x256xf32> to vector<32x256xf32>
    %36 = vector.shape_cast %33 : vector<32x256xf32> to vector<1x32x256xf32>
    tpu.vector_store %arg5[%c0_15, %c0_16, %c0_17], %36 {strides = array<i32>} : memref<1x32x256xf32, #tpu.memory_space<vmem>>, vector<1x32x256xf32>,
    return
  }
  func.func @transform_0(%arg0: i32) -> (i32, i32, i32) {
    %c0_i32 = arith.constant 0 : i32
    %c0_i32_0 = arith.constant 0 : i32
    %c0_i32_1 = arith.constant 0 : i32
    return %arg0, %c0_i32, %c0_i32_0 : i32, i32, i32
  }
  func.func @transform_1(%arg0: i32) -> (i32, i32) {
    %c0_i32 = arith.constant 0 : i32
    %c0_i32_0 = arith.constant 0 : i32
    %c0_i32_1 = arith.constant 0 : i32
    return %c0_i32, %c0_i32_0 : i32, i32
  }
  func.func @transform_2(%arg0: i32) -> (i32, i32) {
    %c0_i32 = arith.constant 0 : i32
    %c0_i32_0 = arith.constant 0 : i32
    %c0_i32_1 = arith.constant 0 : i32
    return %c0_i32, %c0_i32_0 : i32, i32
  }
  func.func @transform_3(%arg0: i32) -> (i32, i32) {
    %c0_i32 = arith.constant 0 : i32
    %c0_i32_0 = arith.constant 0 : i32
    %c0_i32_1 = arith.constant 0 : i32
    return %c0_i32, %c0_i32_0 : i32, i32
  }
  func.func @transform_4(%arg0: i32) -> (i32, i32, i32) {
    %c0_i32 = arith.constant 0 : i32
    %c0_i32_0 = arith.constant 0 : i32
    %c0_i32_1 = arith.constant 0 : i32
    return %arg0, %c0_i32, %c0_i32_0 : i32, i32, i32
  }
}

</mosaic_0001>

<llo_original>
// kernel: tpu_custom_call.1
$region0: #{tpu_custom_call.1}
  #allocation0 [shape = 'u32[]', space=smem, size = 0x4, offset = 0x4, fixed_abs, tag = 'smem constant byte address 0x4 - core index']
  #allocation1 [shape = 'u32[72,128]{1,0:T(1,128)}', space=vmem, size = 0x9000, scoped, tag = 'internal scratch']
  %s0 = inlined_call_operand.hbm [shape: f32[2,32,256], index: 0, kind: input, shape index: {}]
  %s1 = inlined_call_operand.vmem [shape: f32[32,1], index: 1, kind: input, shape index: {}]
  %s2 = inlined_call_operand.vmem [shape: f32[32,1], index: 2, kind: input, shape index: {}]
  %s3 = inlined_call_operand.vmem [shape: f32[32,32], index: 3, kind: input, shape index: {}]
  %s4 = inlined_call_operand.hbm [shape: f32[2,32,256], index: 4, kind: output, shape index: {}]
  %s5 = sld [smem:[#allocation0]]
  $region53: #{tpu_custom_call.1} parent=0
    _
  %s7 = ssub.s32 1, %s5
  %s8 = scalar_select 0, %s7, %s5
  $region1: #{tpu_custom_call.1} parent=0
    #allocation2 [shape = 'u8[65536]{0}', space=vmem, size = 0x10000, scoped, tag = 'input window, operand 0']
    #allocation3 [shape = 's32[2]{0}', space=sflag, size = 0x8, scoped, tag = 'scoped memory for tpu_custom_call.1']
    #allocation4 [shape = 's32[2]{0}', space=sflag, size = 0x8, scoped, tag = 'scoped memory for tpu_custom_call.1']
    #allocation5 [shape = 'u8[65536]{0}', space=vmem, size = 0x10000, scoped, tag = 'output window, operand 0']
    %9 = vsyncpa [#allocation3], 0
    %s10 = scalar_lea.sflag [#allocation3], 1
    %11 = vsyncpa %s10, 0
    %12 = vsyncpa [#allocation4], 0
    %s13 = scalar_lea.sflag [#allocation4], 1
    %14 = vsyncpa %s13, 0
    loop: start=0, step=1, limit=4
    $region2: #{tpu_custom_call.1} parent=1 // loop_pre_header
      _
    $region3: #{tpu_custom_call.1} parent=1 // loop_header
      %s16 = sphi 0, %s20
      %p17 = scmp.ge.s32.totalorder %s16, 4
      %s26 = sphi 0, %s28
      %s29 = sphi 0, %s26
      %s30 = sphi 0, %s29
      %s46 = sphi 0, %s30
      %s50 = sphi 0, %s50
      %s52 = sphi 0, %s50
      %s53 = sphi 0, %s52
      %s67 = sphi 0, %s53
      %s71 = sphi 0, %s71
      %s73 = sphi 0, %s71
      %s74 = sphi 0, %s73
      %s88 = sphi 0, %s74
      %s92 = sphi 0, %s92
      %s94 = sphi 0, %s92
      %s95 = sphi 0, %s94
      %s109 = sphi 0, %s95
      %s115 = sphi 0, %s117
      %s118 = sphi 0, %s115
      %s119 = sphi 0, %s118
      %s135 = sphi 0, %s119
    $region4: #{tpu_custom_call.1} parent=1 // loop_header_branch
      %19 = sbr.rel (%p17) target = $region8
    $region5: #{tpu_custom_call.1} parent=1 // loop_body
      %s21 = ssub.s32 %s16, 1
      %s22 = ssub.s32 %s16, 2
      %s23 = sadd.s32 %s16, 1
      %s24 = ssub.s32 %s16, %s23
      %p25 = scmp.eq.s32.totalorder %s24, 0
      %s27 = sadd.s32 %s26, 1
      %s28 = scalar_select %p25, %s26, %s27
      %p31 = pneg %p25
      %p32 = scmp.eq.s32.totalorder %s16, 1
      %p33 = por %p31, %p32
      %p34 = scmp.ne.s32.totalorder %s26, %s29
      %p35 = scmp.eq.s32.totalorder %s16, 0
      %p36 = por %p34, %p35
      %p37 = scmp.ne.s32.totalorder %s26, %s29
      %p38 = scmp.eq.s32.totalorder %s21, 1
      %p39 = por %p37, %p38
      %p40 = scmp.ne.s32.totalorder %s29, %s30
      %p41 = scmp.eq.s32.totalorder %s21, 0
      %p42 = por %p40, %p41
      %p43 = scmp.ne.s32.totalorder %s29, %s30
      %p44 = scmp.eq.s32.totalorder %s22, 1
      %p45 = por %p43, %p44
      %p47 = scmp.ne.s32.totalorder %s30, %s46
      %p48 = scmp.eq.s32.totalorder %s22, 0
      %p49 = por %p47, %p48
      %s51 = sadd.s32 %s50, 1
      %p54 = scmp.eq.s32.totalorder %s16, 1
      %p55 = scmp.ne.s32.totalorder %s50, %s52
      %p56 = scmp.eq.s32.totalorder %s16, 0
      %p57 = por %p55, %p56
      %p58 = scmp.ne.s32.totalorder %s50, %s52
      %p59 = scmp.eq.s32.totalorder %s21, 1
      %p60 = por %p58, %p59
      %p61 = scmp.ne.s32.totalorder %s52, %s53
      %p62 = scmp.eq.s32.totalorder %s21, 0
      %p63 = por %p61, %p62
      %p64 = scmp.ne.s32.totalorder %s52, %s53
      %p65 = scmp.eq.s32.totalorder %s22, 1
      %p66 = por %p64, %p65
      %p68 = scmp.ne.s32.totalorder %s53, %s67
      %p69 = scmp.eq.s32.totalorder %s22, 0
      %p70 = por %p68, %p69
      %s72 = sadd.s32 %s71, 1
      %p75 = scmp.eq.s32.totalorder %s16, 1
      %p76 = scmp.ne.s32.totalorder %s71, %s73
      %p77 = scmp.eq.s32.totalorder %s16, 0
      %p78 = por %p76, %p77
      %p79 = scmp.ne.s32.totalorder %s71, %s73
      %p80 = scmp.eq.s32.totalorder %s21, 1
      %p81 = por %p79, %p80
      %p82 = scmp.ne.s32.totalorder %s73, %s74
      %p83 = scmp.eq.s32.totalorder %s21, 0
      %p84 = por %p82, %p83
      %p85 = scmp.ne.s32.totalorder %s73, %s74
      %p86 = scmp.eq.s32.totalorder %s22, 1
      %p87 = por %p85, %p86
      %p89 = scmp.ne.s32.totalorder %s74, %s88
      %p90 = scmp.eq.s32.totalorder %s22, 0
      %p91 = por %p89, %p90
      %s93 = sadd.s32 %s92, 1
      %p96 = scmp.eq.s32.totalorder %s16, 1
      %p97 = scmp.ne.s32.totalorder %s92, %s94
      %p98 = scmp.eq.s32.totalorder %s16, 0
      %p99 = por %p97, %p98
      %p100 = scmp.ne.s32.totalorder %s92, %s94
      %p101 = scmp.eq.s32.totalorder %s21, 1
      %p102 = por %p100, %p101
      %p103 = scmp.ne.s32.totalorder %s94, %s95
      %p104 = scmp.eq.s32.totalorder %s21, 0
      %p105 = por %p103, %p104
      %p106 = scmp.ne.s32.totalorder %s94, %s95
      %p107 = scmp.eq.s32.totalorder %s22, 1
      %p108 = por %p106, %p107
      %p110 = scmp.ne.s32.totalorder %s95, %s109
      %p111 = scmp.eq.s32.totalorder %s22, 0
      %p112 = por %p110, %p111
      %s113 = ssub.s32 %s16, %s23
      %p114 = scmp.eq.s32.totalorder %s113, 0
      %s116 = sadd.s32 %s115, 1
      %s117 = scalar_select %p114, %s115, %s116
      %p120 = pneg %p114
      %p121 = scmp.eq.s32.totalorder %s16, 1
      %p122 = por %p120, %p121
      %p123 = scmp.ne.s32.totalorder %s115, %s118
      %p124 = scmp.eq.s32.totalorder %s16, 0
      %p125 = por %p123, %p124
      %p126 = scmp.ne.s32.totalorder %s115, %s118
      %p127 = scmp.eq.s32.totalorder %s21, 1
      %p128 = por %p126, %p127
      %p129 = scmp.ne.s32.totalorder %s118, %s119
      %p130 = scmp.eq.s32.totalorder %s21, 0
      %p131 = por %p129, %p130
      %p132 = scmp.ne.s32.totalorder %s118, %s119
      %p133 = scmp.eq.s32.totalorder %s22, 1
      %p134 = por %p132, %p133
      %p136 = scmp.ne.s32.totalorder %s119, %s135
      %p137 = scmp.eq.s32.totalorder %s22, 0
      %p138 = por %p136, %p137
      %p139 = scmp.le.s32.totalorder 1, %s16
      %p140 = scmp.lt.s32.totalorder %s16, 3
      %p141 = pnand %p139, %p140
      %p142 = pneg %p141
      // Predicated region
      $region9: #{tpu_custom_call.1} parent=5 // pred_check
        _
      $region10: #{tpu_custom_call.1} parent=5 // pred_check_branch
        %144 = sbr.rel (%p141) target = $region12
      $region11: #{tpu_custom_call.1} parent=5 // pred_region
        %s145 = ssub.s32 %s16, 1
        // Predicated region
        $region13: #{tpu_custom_call.1} parent=11 // pred_check
          %p146 = pneg %p63
        $region14: #{tpu_custom_call.1} parent=11 // pred_check_branch
          %148 = sbr.rel (%p146) target = $region16
        $region15: #{tpu_custom_call.1} parent=11 // pred_region
          _
        $region16: #{tpu_custom_call.1} parent=11 // pred_fallthru
          _
        // Predicated region
        $region17: #{tpu_custom_call.1} parent=11 // pred_check
          %p149 = pneg %p84
        $region18: #{tpu_custom_call.1} parent=11 // pred_check_branch
          %151 = sbr.rel (%p149) target = $region20
        $region19: #{tpu_custom_call.1} parent=11 // pred_region
          _
        $region20: #{tpu_custom_call.1} parent=11 // pred_fallthru
          _
        // Predicated region
        $region21: #{tpu_custom_call.1} parent=11 // pred_check
          %p152 = pneg %p105
        $region22: #{tpu_custom_call.1} parent=11 // pred_check_branch
          %154 = sbr.rel (%p152) target = $region24
        $region23: #{tpu_custom_call.1} parent=11 // pred_region
          _
        $region24: #{tpu_custom_call.1} parent=11 // pred_fallthru
          _
      $region12: #{tpu_custom_call.1} parent=5 // pred_fallthru
        _
      %p155 = scmp.lt.s32.totalorder %s16, 2
      // Predicated region
      $region25: #{tpu_custom_call.1} parent=5 // pred_check
        %p156 = pneg %p155
      $region26: #{tpu_custom_call.1} parent=5 // pred_check_branch
        %158 = sbr.rel (%p156) target = $region28
      $region27: #{tpu_custom_call.1} parent=5 // pred_region
        // Predicated region
        $region29: #{tpu_custom_call.1} parent=27 // pred_check
          %p159 = pneg %p36
        $region30: #{tpu_custom_call.1} parent=27 // pred_check_branch
          %161 = sbr.rel (%p159) target = $region32
        $region31: #{tpu_custom_call.1} parent=27 // pred_region
          %s162 = sand.u32 %s26, 1
          %s163 = scalar_lea.sflag [#allocation3], %s162
          %s164 = sand.u32 %s26, 1
          %s165 = smul.addr %s164, 64
          %s166 = scalar_lea.vmem [#allocation2], %s165
          %168 = vsyncadd %s163, 0
          %s169 = smul.addr %s16, 8
          %s170 = smul.addr %s169, 8
          %s171 = scalar_lea.hbm %s0, %s170
          %s172 = sshll.u32 %s171, 4
          %s173 = int_to_ptr.hbm [resolvable:$true] %s172
          %s174 = sshll.u32 %s166, 4
          %s175 = int_to_ptr.vmem [resolvable:$true] %s174
          %180 = dma.hbm_to_vmem [thread:$0]  %s173, 1024, %s175, %s163, 256, 256, 16
        $region32: #{tpu_custom_call.1} parent=27 // pred_fallthru
          _
      $region28: #{tpu_custom_call.1} parent=5 // pred_fallthru
        _
      %p181 = scmp.le.s32.totalorder 1, %s16
      %p182 = scmp.lt.s32.totalorder %s16, 3
      %p183 = pnand %p181, %p182
      %p184 = pneg %p183
      // Predicated region
      $region33: #{tpu_custom_call.1} parent=5 // pred_check
        _
      $region34: #{tpu_custom_call.1} parent=5 // pred_check_branch
        %186 = sbr.rel (%p183) target = $region36
      $region35: #{tpu_custom_call.1} parent=5 // pred_region
        %s187 = ssub.s32 %s16, 1
        %s188 = sand.u32 %s29, 1
        %s189 = scalar_lea.sflag [#allocation3], %s188
        %s190 = sand.u32 %s29, 1
        %s191 = smul.addr %s190, 64
        %s192 = scalar_lea.vmem [#allocation2], %s191
        // Predicated region
        $region37: #{tpu_custom_call.1} parent=35 // pred_check
          %p193 = pneg %p42
        $region38: #{tpu_custom_call.1} parent=35 // pred_check_branch
          %195 = sbr.rel (%p193) target = $region40
        $region39: #{tpu_custom_call.1} parent=35 // pred_region
          %197 = dma.done %s189, 1024
        $region40: #{tpu_custom_call.1} parent=35 // pred_fallthru
          _
        %s198 = sand.u32 %s29, 1
        %s199 = scalar_lea.sflag [#allocation3], %s198
        %s200 = sand.u32 %s29, 1
        %s201 = smul.addr %s200, 64
        %s202 = scalar_lea.vmem [#allocation2], %s201
        %p203 = pneg %p42
        %p204 = pneg %p39
        %p205 = pneg %p63
        %p206 = pneg %p60
        %p207 = pneg %p84
        %p208 = pneg %p81
        %p209 = pneg %p105
        %p210 = pneg %p102
        %p211 = pneg %p131
        %p212 = pneg %p128
        %s213 = sand.u32 %s118, 1
        %s214 = scalar_lea.sflag [#allocation4], %s213
        %s215 = sand.u32 %s118, 1
        %s216 = smul.addr %s215, 64
        %s217 = scalar_lea.vmem [#allocation5], %s216
        %v218 = vld [vmem:[%s192] sm:$0xff]
        %v219 = vld [vmem:[%s192 + $0x8] sm:$0xff]
        %v220 = vld [vmem:[%s192 + $0x10] sm:$0xff]
        %v221 = vld [vmem:[%s192 + $0x18] sm:$0xff]
        %v222 = vld [vmem:[%s192 + $0x20] sm:$0xff]
        %v223 = vld [vmem:[%s192 + $0x28] sm:$0xff]
        %v224 = vld [vmem:[%s192 + $0x30] sm:$0xff]
        %v225 = vld [vmem:[%s192 + $0x38] sm:$0xff]
        %v226 = vld [vmem:[%s3] sm:$0xff]
        %v227 = vld [vmem:[%s3 + $0x8] sm:$0xff]
        %v228 = vld [vmem:[%s3 + $0x10] sm:$0xff]
        %v229 = vld [vmem:[%s3 + $0x18] sm:$0xff]
        %v230 = vld [vmem:[%s1] sm:$0xff]
        %v231 = vld [vmem:[%s1 + $0x8] sm:$0xff]
        %v232 = vld [vmem:[%s1 + $0x10] sm:$0xff]
        %v233 = vld [vmem:[%s1 + $0x18] sm:$0xff]
        %v234 = vld [vmem:[%s2] sm:$0xff]
        %v235 = vld [vmem:[%s2 + $0x8] sm:$0xff]
        %v236 = vld [vmem:[%s2 + $0x10] sm:$0xff]
        %v237 = vld [vmem:[%s2 + $0x18] sm:$0xff]
        %v238 = vadd.f32 %v218, %v219
        %239 = vadd.xlane.f32.xlu0 %v238
        %v240 = vpop.xlane.xlu0 %239
        %v241 = vadd.f32 %v220, %v221
        %242 = vadd.xlane.f32.xlu0 %v241
        %v243 = vpop.xlane.xlu0 %242
        %v244 = vadd.f32 %v222, %v223
        %245 = vadd.xlane.f32.xlu0 %v244
        %v246 = vpop.xlane.xlu0 %245
        %v247 = vadd.f32 %v224, %v225
        %248 = vadd.xlane.f32.xlu0 %v247
        %v249 = vpop.xlane.xlu0 %248
        %v250 = vmul.f32 %v218, %v218
        %v251 = vmul.f32 %v219, %v219
        %v252 = vmul.f32 %v220, %v220
        %v253 = vmul.f32 %v221, %v221
        %v254 = vmul.f32 %v222, %v222
        %v255 = vmul.f32 %v223, %v223
        %v256 = vmul.f32 %v224, %v224
        %v257 = vmul.f32 %v225, %v225
        %v258 = vadd.f32 %v250, %v251
        %259 = vadd.xlane.f32.xlu0 %v258
        %v260 = vpop.xlane.xlu0 %259
        %v261 = vadd.f32 %v252, %v253
        %262 = vadd.xlane.f32.xlu0 %v261
        %v263 = vpop.xlane.xlu0 %262
        %v264 = vadd.f32 %v254, %v255
        %265 = vadd.xlane.f32.xlu0 %v264
        %v266 = vpop.xlane.xlu0 %265
        %v267 = vadd.f32 %v256, %v257
        %268 = vadd.xlane.f32.xlu0 %v267
        %v269 = vpop.xlane.xlu0 %268
        %vm270 = vcmask 261120
        %v272 = vsel %vm270, %v226, 0
        %v275 = vsel %vm270, %v227, 0
        %v278 = vsel %vm270, %v228, 0
        %v281 = vsel %vm270, %v229, 0
        %283 = vmatpush.msra.mxu0 0.0
        %284 = vmatpush.msra.mxu0 0.0
        %285 = vmatpush.msra.mxu0 0.0
        %286 = vmatpush.msra.mxu0 0.0
        %287 = vmatpush.msra.mxu0 0.0
        %288 = vmatpush.msra.mxu0 0.0
        %289 = vmatpush.msra.mxu0 0.0
        %290 = vmatpush.msra.mxu0 0.0
        %291 = vmatpush.msra.mxu0 0.0
        %292 = vmatpush.msra.mxu0 0.0
        %293 = vmatpush.msra.mxu0 0.0
        %294 = vmatpush.msra.mxu0 0.0
        %295 = vmatpush.msra.mxu0 %v249
        %296 = vmatpush.msra.mxu0 %v246
        %297 = vmatpush.msra.mxu0 %v243
        %298 = vmatpush.msra.mxu0 %v240
        %299 = vmatmul.f32.gmra.mxu0 %v272
        %v300 = vpop.f32.mrf.mxu0
        %v301 = vadd.f32 0.0, %v300
        %302 = vmatmul.f32.gmra.mxu0 %v275
        %v303 = vpop.f32.mrf.mxu0
        %v304 = vadd.f32 0.0, %v303
        %305 = vmatmul.f32.gmra.mxu0 %v278
        %v306 = vpop.f32.mrf.mxu0
        %v307 = vadd.f32 0.0, %v306
        %308 = vmatmul.f32.gmra.mxu0 %v281
        %v309 = vpop.f32.mrf.mxu0
        %v310 = vadd.f32 0.0, %v309
        %311 = vdwg.mxu0
        %v312 = vmul.f32 %v301, 0.00390625
        %v313 = vmul.f32 %v304, 0.00390625
        %v314 = vmul.f32 %v307, 0.00390625
        %v315 = vmul.f32 %v310, 0.00390625
        %316 = vmatpush.msra.mxu0 0.0
        %317 = vmatpush.msra.mxu0 0.0
        %318 = vmatpush.msra.mxu0 0.0
        %319 = vmatpush.msra.mxu0 0.0
        %320 = vmatpush.msra.mxu0 0.0
        %321 = vmatpush.msra.mxu0 0.0
        %322 = vmatpush.msra.mxu0 0.0
        %323 = vmatpush.msra.mxu0 0.0
        %324 = vmatpush.msra.mxu0 0.0
        %325 = vmatpush.msra.mxu0 0.0
        %326 = vmatpush.msra.mxu0 0.0
        %327 = vmatpush.msra.mxu0 0.0
        %328 = vmatpush.msra.mxu0 %v269
        %329 = vmatpush.msra.mxu0 %v266
        %330 = vmatpush.msra.mxu0 %v263
        %331 = vmatpush.msra.mxu0 %v260
        %332 = vmatmul.f32.gmra.mxu0 %v272
        %v333 = vpop.f32.mrf.mxu0
        %v334 = vadd.f32 0.0, %v333
        %335 = vmatmul.f32.gmra.mxu0 %v275
        %v336 = vpop.f32.mrf.mxu0
        %v337 = vadd.f32 0.0, %v336
        %338 = vmatmul.f32.gmra.mxu0 %v278
        %v339 = vpop.f32.mrf.mxu0
        %v340 = vadd.f32 0.0, %v339
        %341 = vmatmul.f32.gmra.mxu0 %v281
        %v342 = vpop.f32.mrf.mxu0
        %v343 = vadd.f32 0.0, %v342
        %344 = vdwg.mxu0
        %v345 = vmul.f32 %v334, 0.00390625
        %v346 = vmul.f32 %v337, 0.00390625
        %v347 = vmul.f32 %v340, 0.00390625
        %v348 = vmul.f32 %v343, 0.00390625
        %v349 = vmul.f32 %v312, %v312
        %v350 = vmul.f32 %v313, %v313
        %v351 = vmul.f32 %v314, %v314
        %v352 = vmul.f32 %v315, %v315
        %v353 = vsub.f32 %v345, %v349
        %v354 = vsub.f32 %v346, %v350
        %v355 = vsub.f32 %v347, %v351
        %v356 = vsub.f32 %v348, %v352
        %v357 = vadd.f32 %v353, 1e-05
        %v358 = vadd.f32 %v354, 1e-05
        %v359 = vadd.f32 %v355, 1e-05
        %v360 = vadd.f32 %v356, 1e-05
        %v361 = vrsqrt.pop %v357
        %v362 = vmul.f32 %v361, %v357
        %v363 = vmul.f32 %v362, %v361
        %v364 = vmul.f32 0.5, %v363
        %v365 = vsub.f32 1.5, %v364
        %v366 = vmul.f32 %v361, %v365
        %vm367 = vweird.f32 %v357
        %vm368 = vweird.f32 %v361
        %vm369 = vmor %vm367, %vm368
        %v370 = vsel %vm369, %v361, %v366
        %v371 = vrsqrt.pop %v358
        %v372 = vmul.f32 %v371, %v358
        %v373 = vmul.f32 %v372, %v371
        %v374 = vmul.f32 0.5, %v373
        %v375 = vsub.f32 1.5, %v374
        %v376 = vmul.f32 %v371, %v375
        %vm377 = vweird.f32 %v358
        %vm378 = vweird.f32 %v371
        %vm379 = vmor %vm377, %vm378
        %v380 = vsel %vm379, %v371, %v376
        %v381 = vrsqrt.pop %v359
        %v382 = vmul.f32 %v381, %v359
        %v383 = vmul.f32 %v382, %v381
        %v384 = vmul.f32 0.5, %v383
        %v385 = vsub.f32 1.5, %v384
        %v386 = vmul.f32 %v381, %v385
        %vm387 = vweird.f32 %v359
        %vm388 = vweird.f32 %v381
        %vm389 = vmor %vm387, %vm388
        %v390 = vsel %vm389, %v381, %v386
        %v391 = vrsqrt.pop %v360
        %v392 = vmul.f32 %v391, %v360
        %v393 = vmul.f32 %v392, %v391
        %v394 = vmul.f32 0.5, %v393
        %v395 = vsub.f32 1.5, %v394
        %v396 = vmul.f32 %v391, %v395
        %vm397 = vweird.f32 %v360
        %vm398 = vweird.f32 %v391
        %vm399 = vmor %vm397, %vm398
        %v400 = vsel %vm399, %v391, %v396
        %v401 = vmul.f32 %v230, %v370
        %v402 = vmul.f32 %v231, %v380
        %v403 = vmul.f32 %v232, %v390
        %v404 = vmul.f32 %v233, %v400
        %v405 = vmul.f32 %v312, %v401
        %v406 = vmul.f32 %v313, %v402
        %v407 = vmul.f32 %v314, %v403
        %v408 = vmul.f32 %v315, %v404
        %v409 = vsub.f32 %v234, %v405
        %v410 = vsub.f32 %v235, %v406
        %v411 = vsub.f32 %v236, %v407
        %v412 = vsub.f32 %v237, %v408
        %414 = vset.pattern.permute.xlu0 0
        %415 = vperm.xlu0 %414, %v401
        %v416 = vpop.permute.xlu0 %415
        %419 = vset.pattern.permute.xlu0 0
        %420 = vperm.xlu0 %419, %v402
        %v421 = vpop.permute.xlu0 %420
        %424 = vset.pattern.permute.xlu0 0
        %425 = vperm.xlu0 %424, %v403
        %v426 = vpop.permute.xlu0 %425
        %429 = vset.pattern.permute.xlu0 0
        %430 = vperm.xlu0 %429, %v404
        %v431 = vpop.permute.xlu0 %430
        %v433 = vmul.f32 %v218, %v416
        %v434 = vmul.f32 %v219, %v416
        %v435 = vmul.f32 %v220, %v421
        %v436 = vmul.f32 %v221, %v421
        %v437 = vmul.f32 %v222, %v426
        %v438 = vmul.f32 %v223, %v426
        %v439 = vmul.f32 %v224, %v431
        %v440 = vmul.f32 %v225, %v431
        %442 = vset.pattern.permute.xlu0 0
        %443 = vperm.xlu0 %442, %v409
        %v444 = vpop.permute.xlu0 %443
        %447 = vset.pattern.permute.xlu0 0
        %448 = vperm.xlu0 %447, %v410
        %v449 = vpop.permute.xlu0 %448
        %452 = vset.pattern.permute.xlu0 0
        %453 = vperm.xlu0 %452, %v411
        %v454 = vpop.permute.xlu0 %453
        %457 = vset.pattern.permute.xlu0 0
        %458 = vperm.xlu0 %457, %v412
        %v459 = vpop.permute.xlu0 %458
        %v461 = vadd.f32 %v433, %v444
        %v462 = vadd.f32 %v434, %v444
        %v463 = vadd.f32 %v435, %v449
        %v464 = vadd.f32 %v436, %v449
        %v465 = vadd.f32 %v437, %v454
        %v466 = vadd.f32 %v438, %v454
        %v467 = vadd.f32 %v439, %v459
        %v468 = vadd.f32 %v440, %v459
        %v469 = vxor.u32 %v461, 2147483648
        %v470 = vxor.u32 %v462, 2147483648
        %v471 = vxor.u32 %v463, 2147483648
        %v472 = vxor.u32 %v464, 2147483648
        %v473 = vxor.u32 %v465, 2147483648
        %v474 = vxor.u32 %v466, 2147483648
        %v475 = vxor.u32 %v467, 2147483648
        %v476 = vxor.u32 %v468, 2147483648
        %v477 = vmul.f32 %v469, 1.442695
        %v478 = vpow.pop %v477
        %v479 = vmul.f32 %v470, 1.442695
        %v480 = vpow.pop %v479
        %v481 = vmul.f32 %v471, 1.442695
        %v482 = vpow.pop %v481
        %v483 = vmul.f32 %v472, 1.442695
        %v484 = vpow.pop %v483
        %v485 = vmul.f32 %v473, 1.442695
        %v486 = vpow.pop %v485
        %v487 = vmul.f32 %v474, 1.442695
        %v488 = vpow.pop %v487
        %v489 = vmul.f32 %v475, 1.442695
        %v490 = vpow.pop %v489
        %v491 = vmul.f32 %v476, 1.442695
        %v492 = vpow.pop %v491
        %v493 = vadd.f32 %v478, 1.0
        %v494 = vadd.f32 %v480, 1.0
        %v495 = vadd.f32 %v482, 1.0
        %v496 = vadd.f32 %v484, 1.0
        %v497 = vadd.f32 %v486, 1.0
        %v498 = vadd.f32 %v488, 1.0
        %v499 = vadd.f32 %v490, 1.0
        %v500 = vadd.f32 %v492, 1.0
        %v501 = vrcp.pop %v493
        %v502 = vmul.f32 %v493, %v501
        %v503 = vsub.f32 1.0, %v502
        %v504 = vmul.f32 %v501, %v503
        %v505 = vadd.f32 %v501, %v504
        %vm506 = vweird.f32 %v493
        %vm507 = vweird.f32 %v501
        %vm508 = vmor %vm506, %vm507
        %v509 = vsel %vm508, %v501, %v505
        %v510 = vand.u32 2147483647, %v493
        %vm511 = vcmp.eq.f32.partialorder %v510, 8.507059e+37
        %v512 = vand.u32 %v493, 2147483648
        %v513 = vor.u32 1.1754944e-38, %v512
        %v514 = vsel %vm511, %v513, %v509
        %v515 = vmul.f32 1.0, %v514
        %v516 = vrcp.pop %v494
        %v517 = vmul.f32 %v494, %v516
        %v518 = vsub.f32 1.0, %v517
        %v519 = vmul.f32 %v516, %v518
        %v520 = vadd.f32 %v516, %v519
        %vm521 = vweird.f32 %v494
        %vm522 = vweird.f32 %v516
        %vm523 = vmor %vm521, %vm522
        %v524 = vsel %vm523, %v516, %v520
        %v525 = vand.u32 2147483647, %v494
        %vm526 = vcmp.eq.f32.partialorder %v525, 8.507059e+37
        %v527 = vand.u32 %v494, 2147483648
        %v528 = vor.u32 1.1754944e-38, %v527
        %v529 = vsel %vm526, %v528, %v524
        %v530 = vmul.f32 1.0, %v529
        %v531 = vrcp.pop %v495
        %v532 = vmul.f32 %v495, %v531
        %v533 = vsub.f32 1.0, %v532
        %v534 = vmul.f32 %v531, %v533
        %v535 = vadd.f32 %v531, %v534
        %vm536 = vweird.f32 %v495
        %vm537 = vweird.f32 %v531
        %vm538 = vmor %vm536, %vm537
        %v539 = vsel %vm538, %v531, %v535
        %v540 = vand.u32 2147483647, %v495
        %vm541 = vcmp.eq.f32.partialorder %v540, 8.507059e+37
        %v542 = vand.u32 %v495, 2147483648
        %v543 = vor.u32 1.1754944e-38, %v542
        %v544 = vsel %vm541, %v543, %v539
        %v545 = vmul.f32 1.0, %v544
        %v546 = vrcp.pop %v496
        %v547 = vmul.f32 %v496, %v546
        %v548 = vsub.f32 1.0, %v547
        %v549 = vmul.f32 %v546, %v548
        %v550 = vadd.f32 %v546, %v549
        %vm551 = vweird.f32 %v496
        %vm552 = vweird.f32 %v546
        %vm553 = vmor %vm551, %vm552
        %v554 = vsel %vm553, %v546, %v550
        %v555 = vand.u32 2147483647, %v496
        %vm556 = vcmp.eq.f32.partialorder %v555, 8.507059e+37
        %v557 = vand.u32 %v496, 2147483648
        %v558 = vor.u32 1.1754944e-38, %v557
        %v559 = vsel %vm556, %v558, %v554
        %v560 = vmul.f32 1.0, %v559
        %v561 = vrcp.pop %v497
        %v562 = vmul.f32 %v497, %v561
        %v563 = vsub.f32 1.0, %v562
        %v564 = vmul.f32 %v561, %v563
        %v565 = vadd.f32 %v561, %v564
        %vm566 = vweird.f32 %v497
        %vm567 = vweird.f32 %v561
        %vm568 = vmor %vm566, %vm567
        %v569 = vsel %vm568, %v561, %v565
        %v570 = vand.u32 2147483647, %v497
        %vm571 = vcmp.eq.f32.partialorder %v570, 8.507059e+37
        %v572 = vand.u32 %v497, 2147483648
        %v573 = vor.u32 1.1754944e-38, %v572
        %v574 = vsel %vm571, %v573, %v569
        %v575 = vmul.f32 1.0, %v574
        %v576 = vrcp.pop %v498
        %v577 = vmul.f32 %v498, %v576
        %v578 = vsub.f32 1.0, %v577
        %v579 = vmul.f32 %v576, %v578
        %v580 = vadd.f32 %v576, %v579
        %vm581 = vweird.f32 %v498
        %vm582 = vweird.f32 %v576
        %vm583 = vmor %vm581, %vm582
        %v584 = vsel %vm583, %v576, %v580
        %v585 = vand.u32 2147483647, %v498
        %vm586 = vcmp.eq.f32.partialorder %v585, 8.507059e+37
        %v587 = vand.u32 %v498, 2147483648
        %v588 = vor.u32 1.1754944e-38, %v587
        %v589 = vsel %vm586, %v588, %v584
        %v590 = vmul.f32 1.0, %v589
        %v591 = vrcp.pop %v499
        %v592 = vmul.f32 %v499, %v591
        %v593 = vsub.f32 1.0, %v592
        %v594 = vmul.f32 %v591, %v593
        %v595 = vadd.f32 %v591, %v594
        %vm596 = vweird.f32 %v499
        %vm597 = vweird.f32 %v591
        %vm598 = vmor %vm596, %vm597
        %v599 = vsel %vm598, %v591, %v595
        %v600 = vand.u32 2147483647, %v499
        %vm601 = vcmp.eq.f32.partialorder %v600, 8.507059e+37
        %v602 = vand.u32 %v499, 2147483648
        %v603 = vor.u32 1.1754944e-38, %v602
        %v604 = vsel %vm601, %v603, %v599
        %v605 = vmul.f32 1.0, %v604
        %v606 = vrcp.pop %v500
        %v607 = vmul.f32 %v500, %v606
        %v608 = vsub.f32 1.0, %v607
        %v609 = vmul.f32 %v606, %v608
        %v610 = vadd.f32 %v606, %v609
        %vm611 = vweird.f32 %v500
        %vm612 = vweird.f32 %v606
        %vm613 = vmor %vm611, %vm612
        %v614 = vsel %vm613, %v606, %v610
        %v615 = vand.u32 2147483647, %v500
        %vm616 = vcmp.eq.f32.partialorder %v615, 8.507059e+37
        %v617 = vand.u32 %v500, 2147483648
        %v618 = vor.u32 1.1754944e-38, %v617
        %v619 = vsel %vm616, %v618, %v614
        %v620 = vmul.f32 1.0, %v619
        %v621 = vmul.f32 %v461, %v515
        %v622 = vmul.f32 %v462, %v530
        %v623 = vmul.f32 %v463, %v545
        %v624 = vmul.f32 %v464, %v560
        %v625 = vmul.f32 %v465, %v575
        %v626 = vmul.f32 %v466, %v590
        %v627 = vmul.f32 %v467, %v605
        %v628 = vmul.f32 %v468, %v620
        %629 = vst [vmem:[%s217] sm:$0xff] %v621
        %630 = vst [vmem:[%s217 + $0x8] sm:$0xff] %v622
        %631 = vst [vmem:[%s217 + $0x10] sm:$0xff] %v623
        %632 = vst [vmem:[%s217 + $0x18] sm:$0xff] %v624
        %633 = vst [vmem:[%s217 + $0x20] sm:$0xff] %v625
        %634 = vst [vmem:[%s217 + $0x28] sm:$0xff] %v626
        %635 = vst [vmem:[%s217 + $0x30] sm:$0xff] %v627
        %636 = vst [vmem:[%s217 + $0x38] sm:$0xff] %v628
        %s637 = sand.u32 %s118, 1
        %s638 = scalar_lea.sflag [#allocation4], %s637
        %s639 = sand.u32 %s118, 1
        %s640 = smul.addr %s639, 64
        %s641 = scalar_lea.vmem [#allocation5], %s640
        // Predicated region
        $region41: #{tpu_custom_call.1} parent=35 // pred_check
          %p642 = pneg %p128
        $region42: #{tpu_custom_call.1} parent=35 // pred_check_branch
          %644 = sbr.rel (%p642) target = $region44
        $region43: #{tpu_custom_call.1} parent=35 // pred_region
          %646 = vsyncadd %s638, 0
          %s647 = smul.addr %s21, 8
          %s648 = smul.addr %s647, 8
          %s649 = scalar_lea.hbm %s4, %s648
          %s650 = sshll.u32 %s641, 4
          %s651 = int_to_ptr.vmem [resolvable:$true] %s650
          %s652 = sshll.u32 %s649, 4
          %s653 = int_to_ptr.hbm [resolvable:$true] %s652
          %658 = dma.vmem_to_hbm [thread:$0]  %s651, 1024, %s653, %s638, 256, 256, 16
        $region44: #{tpu_custom_call.1} parent=35 // pred_fallthru
          _
      $region36: #{tpu_custom_call.1} parent=5 // pred_fallthru
        _
      %p659 = scmp.le.s32.totalorder 2, %s16
      // Predicated region
      $region45: #{tpu_custom_call.1} parent=5 // pred_check
        %p660 = pneg %p659
      $region46: #{tpu_custom_call.1} parent=5 // pred_check_branch
        %662 = sbr.rel (%p660) target = $region48
      $region47: #{tpu_custom_call.1} parent=5 // pred_region
        %s663 = ssub.s32 %s16, 2
        // Predicated region
        $region49: #{tpu_custom_call.1} parent=47 // pred_check
          %p664 = pneg %p134
        $region50: #{tpu_custom_call.1} parent=47 // pred_check_branch
          %666 = sbr.rel (%p664) target = $region52
        $region51: #{tpu_custom_call.1} parent=47 // pred_region
          %s667 = sand.u32 %s119, 1
          %s668 = scalar_lea.sflag [#allocation4], %s667
          %s669 = sand.u32 %s119, 1
          %s670 = smul.addr %s669, 64
          %s671 = scalar_lea.vmem [#allocation5], %s670
          %673 = dma.done %s668, 1024
        $region52: #{tpu_custom_call.1} parent=47 // pred_fallthru
          _
      $region48: #{tpu_custom_call.1} parent=5 // pred_fallthru
        _
    $region6: #{tpu_custom_call.1} parent=1 // loop_footer
      %s20 = sadd.s32 1, %s16
    $region7: #{tpu_custom_call.1} parent=1 // loop_footer_branch
      %15 = sbr.rel target = $region3
    $region8: #{tpu_custom_call.1} parent=1 // loop_exit
      _
    %674 = vsyncpa [#allocation3], 1
    %s675 = scalar_lea.sflag [#allocation3], 1
    %676 = vsyncpa %s675, 1
    %677 = vsyncpa [#allocation4], 1
    %s678 = scalar_lea.sflag [#allocation4], 1
    %679 = vsyncpa %s678, 1

</llo_original>
